<compile_context>
chip_gen: v5e
topology: v5e:2x2
jax: 0.10.0
libtpu: 0.0.40
codegen_flags: <defaults>
</compile_context>

<pallas_src>
import functools
import math

import jax
import jax.numpy as jnp
from jax.experimental import pallas as pl
from jax.experimental.pallas import tpu as pltpu

# ----------------------------- configuration -------------------------------
FDIM = 32            # fnet feature dim (stand-in for 256)
HDIM = 16            # GRU hidden dim
CDIM = 16            # context dim
CORR_LEVELS = 2
CORR_RADIUS = 2
CORR_FEAT = CORR_LEVELS * (2 * CORR_RADIUS + 1)   # 10
UPF = 4              # 1/4-res features -> 4x convex upsample
LANE = 128

PARALLEL1 = pltpu.CompilerParams(dimension_semantics=("parallel",))


def _round_up(a, m):
    return ((a + m - 1) // m) * m


def _sigmoid(x):
    # numerically-stable sigmoid via tanh (EUP)
    return 0.5 * (jnp.tanh(0.5 * x) + 1.0)


# ---------------------------------------------------------------------------
# Fused conv kernel (in-kernel im2col + MXU matmul + fused epilogue).
# Grid is (B,); each step holds the whole halo-padded spatial map of one batch
# element in VMEM, so InstanceNorm statistics can also be fused.
# TODO(synk): very large images would need halo-aware row tiling (manual DMA);
# at 1/4-1/2 res feature maps a per-batch block fits VMEM comfortably.
# ---------------------------------------------------------------------------
def _conv_fused_kernel(*refs, kh, kw, Ho, Wo, cout, out_chs, n_extra,
                       epilogue, prologue, hdim):
    x_ref, w_ref, b_ref = refs[0], refs[1], refs[2]
    extra_refs = refs[3:3 + n_extra]
    out_refs = refs[3 + n_extra:]

    x = x_ref[0]                                   # (Hp, Wp, Cin) f32
    if prologue:                                   # fused image normalization
        x = 2.0 * (x * (1.0 / 255.0)) - 1.0
    xb = x.astype(jnp.bfloat16)

    cin = w_ref.shape[1]
    coutp = w_ref.shape[2]
    acc = jnp.zeros((Ho, Wo, coutp), jnp.float32)
    t = 0
    for ky in range(kh):
        for kx in range(kw):
            if cin == 1:
                # rank-1 "conv": keep it on the VPU instead of a K=1 matmul
                patch = x[ky:ky + Ho, kx:kx + Wo, :]
                wt = w_ref[t].astype(jnp.float32).reshape(1, 1, coutp)
                acc = acc + patch * wt
            else:
                patch = xb[ky:ky + Ho, kx:kx + Wo, :]           # (Ho,Wo,Cin)
                wt = jnp.broadcast_to(w_ref[t], (Ho, cin, coutp))
                acc = acc + jnp.einsum('hwc,hcn->hwn', patch, wt,
                                       preferred_element_type=jnp.float32)
            t += 1
    acc = acc + b_ref[...]
    y = acc[..., :cout]

    def _inorm(v):
        mu = jnp.mean(jnp.mean(v, axis=1, keepdims=True), axis=0, keepdims=True)
        var = jnp.mean(jnp.mean((v - mu) ** 2, axis=1, keepdims=True),
                       axis=0, keepdims=True)
        return (v - mu) * jax.lax.rsqrt(var + 1e-5)

    if epilogue == 'none':
        outs = (y,)
    elif epilogue == 'relu':
        outs = (jnp.maximum(y, 0.0),)
    elif epilogue == 'in_relu':
        outs = (jnp.maximum(_inorm(y), 0.0),)
    elif epilogue == 'in_split':
        # context head: tanh(hidden part), relu(context part)
        yn = _inorm(y)
        outs = (jnp.tanh(yn[..., :hdim]), jnp.maximum(yn[..., hdim:], 0.0))
    elif epilogue == 'gru_gates':
        czr = extra_refs[0][0]                     # (Ho,Wo,2H)
        h = extra_refs[1][0]                       # (Ho,Wo,H)
        pre = y + czr
        z = _sigmoid(pre[..., :hdim])
        r = _sigmoid(pre[..., hdim:])
        outs = (z, r * h)
    elif epilogue == 'gru_update':
        cq = extra_refs[0][0]
        z = extra_refs[1][0]
        h = extra_refs[2][0]
        q = jnp.tanh(y + cq)
        outs = ((1.0 - z) * h + z * q,)
    elif epilogue == 'add':
        outs = (y + extra_refs[0][0],)
    elif epilogue == 'upsample':
        # mask channels ordered [neighbor][sub-position]; softmax over the 9
        # neighbors + weighted sum with the 3x3 disparity patch, fully fused.
        dpatch = extra_refs[0][0]                  # (Ho, Wo, 9)
        nsub = cout // 9
        groups = [y[..., nb * nsub:(nb + 1) * nsub] for nb in range(9)]
        m = groups[0]
        for g in groups[1:]:
            m = jnp.maximum(m, g)
        es = [jnp.exp(g - m) for g in groups]
        s = es[0]
        for e in es[1:]:
            s = s + e
        num = jnp.zeros_like(m)
        for nb in range(9):
            num = num + es[nb] * dpatch[..., nb:nb + 1]
        outs = (num * pl.reciprocal(s, approx=False),)
    else:
        raise ValueError(epilogue)

    # auto channel-split for multi-output heads sharing one activation
    if len(outs) == 1 and len(out_refs) > 1:
        r = outs[0]
        split, off = [], 0
        for oc in out_chs:
            split.append(r[..., off:off + oc])
            off += oc
        outs = tuple(split)

    for o_ref, o in zip(out_refs, outs):
        o_ref[0] = o


# ------------------------- conv parameter packing ---------------------------
def _s2d_repack(w):
    """Repack a 3x3 stride-2 conv (torch layout) into the equivalent stride-1
    2x2 conv on a space-to-depth input."""
    cout, cin, kh, kw = w.shape
    w2 = jnp.zeros((cout, 4 * cin, 2, 2), w.dtype)
    for py in range(2):
        for px in range(2):
            ph = py * 2 + px
            for di in range(2):
                for dj in range(2):
                    ky, kx = 2 * di + py, 2 * dj + px
                    if ky < kh and kx < kw:
                        w2 = w2.at[:, ph * cin:(ph + 1) * cin, di, dj].set(
                            w[:, :, ky, kx])
    return w2


def conv_prep(w, b, stride=1):
    """One-time packing: tap-major (kh*kw, Cin, Coutp) bf16 weights, Cout
    padded to 128 lanes, bias as (1,1,Coutp) f32."""
    if stride == 2:
        w = _s2d_repack(w)
    cout, cin, kh, kw = w.shape
    coutp = _round_up(cout, LANE)
    wm = jnp.transpose(w, (2, 3, 1, 0)).reshape(kh * kw, cin, cout)
    wm = jnp.pad(wm, ((0, 0), (0, 0), (0, coutp - cout))).astype(jnp.bfloat16)
    bm = jnp.pad(b, (0, coutp - cout)).reshape(1, 1, coutp).astype(jnp.float32)
    return dict(w=wm, b=bm, cout=cout, cin=cin, k=kh, stride=stride)


def _space_to_depth(xp):
    B, Hp, Wp, C = xp.shape
    xp = xp.reshape(B, Hp // 2, 2, Wp // 2, 2, C)
    xp = jnp.transpose(xp, (0, 1, 3, 2, 4, 5))
    return xp.reshape(B, Hp // 2, Wp // 2, 4 * C)


def fused_conv(x, cp, *, prologue=False, epilogue='none', extras=(),
               out_channels=None, pad_value=0.0, hdim=HDIM):
    B, H, W, _ = x.shape
    xp = jnp.pad(x, ((0, 0), (1, 1), (1, 1), (0, 0)),
                 constant_values=pad_value)
    if cp['stride'] == 2:
        assert H % 2 == 0 and W % 2 == 0
        xp = _space_to_depth(xp)   # TODO(synk): one XLA relayout pass
        Ho, Wo = H // 2, W // 2
    else:
        Ho, Wo = H, W
    kh = kw = cp['k']
    cin = cp['cin']
    coutp = cp['w'].shape[-1]
    out_chs = tuple(out_channels) if out_channels is not None else (cp['cout'],)
    n_extra = len(extras)
    _, Hpp, Wpp, Cinp = xp.shape
    assert Cinp == cin

    kernel = functools.partial(
        _conv_fused_kernel, kh=kh, kw=kw, Ho=Ho, Wo=Wo, cout=cp['cout'],
        out_chs=out_chs, n_extra=n_extra, epilogue=epilogue,
        prologue=prologue, hdim=hdim)

    in_specs = [
        pl.BlockSpec((1, Hpp, Wpp, Cinp), lambda b: (b, 0, 0, 0)),
        pl.BlockSpec((kh * kw, cin, coutp), lambda b: (0, 0, 0)),
        pl.BlockSpec((1, 1, coutp), lambda b: (0, 0, 0)),
    ]
    for e in extras:
        ce = int(e.shape[-1])
        in_specs.append(pl.BlockSpec((1, Ho, Wo, ce), lambda b: (b, 0, 0, 0)))

    out_shape = tuple(jax.ShapeDtypeStruct((B, Ho, Wo, c), jnp.float32)
                      for c in out_chs)
    out_specs = tuple(pl.BlockSpec((1, Ho, Wo, c), lambda b: (b, 0, 0, 0))
                      for c in out_chs)
    single = len(out_chs) == 1
    return pl.pallas_call(
        kernel,
        out_shape=out_shape[0] if single else out_shape,
        grid=(B,),
        in_specs=in_specs,
        out_specs=out_specs[0] if single else out_specs,
        compiler_params=PARALLEL1,
    )(xp, cp['w'], cp['b'], *extras)


# ----------------------------- correlation ---------------------------------
def _corr_kernel(fl_ref, fr_ref, o_ref, *, scale):
    # fl, fr: (TB, w, C) f32 -> bf16 in-kernel; NT contraction on the MXU.
    a = fl_ref[...].astype(jnp.bfloat16)
    b = fr_ref[...].astype(jnp.bfloat16)
    c = jnp.einsum('bqc,bkc->bqk', a, b, preferred_element_type=jnp.float32)
    o_ref[...] = (c * scale).astype(o_ref.dtype)


def corr_volume(fl, fr):
    B, h, w, C = fl.shape
    R = B * h
    TB = min(8, R)
    Rp = _round_up(R, TB)
    fl2 = fl.reshape(R, w, C)
    fr2 = fr.reshape(R, w, C)
    if Rp != R:
        fl2 = jnp.pad(fl2, ((0, Rp - R), (0, 0), (0, 0)))
        fr2 = jnp.pad(fr2, ((0, Rp - R), (0, 0), (0, 0)))
    corr = pl.pallas_call(
        functools.partial(_corr_kernel, scale=1.0 / math.sqrt(C)),
        out_shape=jax.ShapeDtypeStruct((Rp, w, w), jnp.bfloat16),
        grid=(Rp // TB,),
        in_specs=[pl.BlockSpec((TB, w, C), lambda i: (i, 0, 0)),
                  pl.BlockSpec((TB, w, C), lambda i: (i, 0, 0))],
        out_specs=pl.BlockSpec((TB, w, w), lambda i: (i, 0, 0)),
        compiler_params=PARALLEL1,
    )(fl2, fr2)
    return corr[:R]                               # (R, w, w) bf16


def build_corr_pyramid(fl, fr):
    corr = corr_volume(fl, fr)
    pyramid = [corr]
    cur = corr
    for _ in range(1, CORR_LEVELS):
        R, q, k = cur.shape
        ke = (k // 2) * 2
        cur = (cur[..., :ke].astype(jnp.float32)
               .reshape(R, q, ke // 2, 2).mean(-1).astype(jnp.bfloat16))
        pyramid.append(cur)
    return pyramid


def _corr_lookup_kernel(disp_ref, *rest, radius, levels):
    # Linear interpolation as dense zero-padded weights reduced over the key
    # axis: replaces the XLA take_along_axis gather of the previous version.
    c_refs = rest[:levels]
    o_ref = rest[levels]
    d = disp_ref[...]                                   # (TB, w, 1) f32
    q = jax.lax.broadcasted_iota(jnp.float32, d.shape, 1)
    x0 = q - d
    feats = []
    for lvl in range(levels):
        cl = c_refs[lvl][...].astype(jnp.float32)       # (TB, w, wl)
        wl = cl.shape[-1]
        kpos = jax.lax.broadcasted_iota(jnp.float32, (1, 1, wl), 2)
        xl = x0 * (1.0 / (2.0 ** lvl))
        for dx in range(-radius, radius + 1):
            pos = xl + float(dx)
            wgt = jnp.maximum(1.0 - jnp.abs(pos - kpos), 0.0)
            feats.append(jnp.sum(cl * wgt, axis=-1, keepdims=True))
    o_ref[...] = jnp.concatenate(feats, axis=-1)


def corr_lookup(pyramid, disp):
    B, h, w, _ = disp.shape
    R = B * h
    TB = min(8, R)
    Rp = _round_up(R, TB)
    ins = [disp.reshape(R, w, 1)] + list(pyramid)
    if Rp != R:
        ins = [jnp.pad(a, ((0, Rp - R), (0, 0), (0, 0))) for a in ins]
    in_specs = [pl.BlockSpec((TB,) + tuple(a.shape[1:]), lambda i: (i, 0, 0))
                for a in ins]
    geo = pl.pallas_call(
        functools.partial(_corr_lookup_kernel, radius=CORR_RADIUS,
                          levels=CORR_LEVELS),
        out_shape=jax.ShapeDtypeStruct((Rp, w, CORR_FEAT), jnp.float32),
        grid=(Rp // TB,),
        in_specs=in_specs,
        out_specs=pl.BlockSpec((TB, w, CORR_FEAT), lambda i: (i, 0, 0)),
        compiler_params=PARALLEL1,
    )(*ins)
    return geo[:R].reshape(B, h, w, CORR_FEAT)


# ----------------------------- upsampling helpers ---------------------------
def disp_neighbors(disp4):
    # 3x3 neighborhood of the (scaled) coarse disparity; tiny (1-channel).
    B, h, w, _ = disp4.shape
    dp = jnp.pad(disp4, ((0, 0), (1, 1), (1, 1), (0, 0)))
    cols = [dp[:, ky:ky + h, kx:kx + w, 0]
            for ky in range(3) for kx in range(3)]
    return jnp.stack(cols, axis=-1)                      # (B,h,w,9)


def rearrange_up(up):
    # (B,h,w,16) -> (B,1,4h,4w) NCHW like torch context_upsample().unsqueeze(1)
    B, h, w, _ = up.shape
    up = up.reshape(B, h, w, UPF, UPF)
    up = jnp.transpose(up, (0, 1, 3, 2, 4)).reshape(B, UPF * h, UPF * w)
    return up[:, None]


# ------------------------------ parameters ----------------------------------
def _init_conv(key, cout, cin, k=3):
    w = jax.random.normal(key, (cout, cin, k, k), jnp.float32) / math.sqrt(cin * k * k)
    b = jnp.zeros((cout,), jnp.float32)
    return w, b


def init_params(key):
    ks = iter(jax.random.split(key, 32))
    p = {}
    p['fnet1'] = conv_prep(*_init_conv(next(ks), 16, 3), stride=2)
    p['fnet2'] = conv_prep(*_init_conv(next(ks), FDIM, 16), stride=2)
    p['cnet1'] = conv_prep(*_init_conv(next(ks), 16, 3), stride=2)
    p['cnet2'] = conv_prep(*_init_conv(next(ks), HDIM + CDIM, 16), stride=2)
    p['zqr'] = conv_prep(*_init_conv(next(ks), 3 * HDIM, CDIM))          # context_zqr_convs[0]
    p['enc_c1'] = conv_prep(*_init_conv(next(ks), 32, CORR_FEAT))
    p['enc_d1'] = conv_prep(*_init_conv(next(ks), 16, 1))
    p['enc_out'] = conv_prep(*_init_conv(next(ks), HDIM - 1, 48))
    p['convzr'] = conv_prep(*_init_conv(next(ks), 2 * HDIM, 2 * HDIM))   # fused convz|convr
    p['convq'] = conv_prep(*_init_conv(next(ks), HDIM, 2 * HDIM))
    p['head1'] = conv_prep(*_init_conv(next(ks), 64, HDIM))              # fused disp|mask feat
    p['disp2'] = conv_prep(*_init_conv(next(ks), 1, 32))
    p['mask2'] = conv_prep(*_init_conv(next(ks), 9 * UPF * UPF, 32))
    return p


# ------------------------------ forward -------------------------------------
def raft_stereo_forward(params, image1, image2, iters=2, scale=1.0):
    # image1/image2: NCHW uint-range images, as in the torch module.
    # 2*(x/255)-1 normalization is fused into the first convs (pad 127.5 -> 0).
    x1 = jnp.transpose(image1, (0, 2, 3, 1))
    x2 = jnp.transpose(image2, (0, 2, 3, 1))

    def fnet(x):
        # TODO(synk): BasicEncoder stand-in (2 strided convs + IN + ReLU).
        y = fused_conv(x, params['fnet1'], prologue=True, pad_value=127.5,
                       epilogue='in_relu')
        y = fused_conv(y, params['fnet2'], epilogue='in_relu')
        return y

    match_left = fnet(x1)
    match_right = fnet(x2)

    # context network (TODO(synk): MultiBasicEncoder stand-in; BatchNorm -> IN)
    c1 = fused_conv(x1, params['cnet1'], prologue=True, pad_value=127.5,
                    epilogue='in_relu')
    net, inp = fused_conv(c1, params['cnet2'], epilogue='in_split',
                          out_channels=(HDIM, CDIM), hdim=HDIM)
    czr, cq = fused_conv(inp, params['zqr'], epilogue='none',
                         out_channels=(2 * HDIM, HDIM))     # [cz|cr], cq

    B, h, w, _ = match_left.shape
    pyramid = build_corr_pyramid(match_left, match_right)
    disp = jnp.zeros((B, h, w, 1), jnp.float32)

    disp_preds = []
    for _ in range(iters):
        geo = corr_lookup(pyramid, disp)
        # motion encoder (BasicMotionEncoder stand-in)
        cfeat = fused_conv(geo, params['enc_c1'], epilogue='relu')
        dfeat = fused_conv(disp, params['enc_d1'], epilogue='relu')
        mfeat = fused_conv(jnp.concatenate([cfeat, dfeat], -1),
                           params['enc_out'], epilogue='relu')
        x = jnp.concatenate([mfeat, disp], axis=-1)          # (B,h,w,HDIM)
        # ConvGRU: convz+convr fused in one matmul, gate math as epilogue
        hx = jnp.concatenate([net, x], axis=-1)
        z, rh = fused_conv(hx, params['convzr'], epilogue='gru_gates',
                           extras=(czr, net), out_channels=(HDIM, HDIM))
        qx = jnp.concatenate([rh, x], axis=-1)
        net = fused_conv(qx, params['convq'], epilogue='gru_update',
                         extras=(cq, z, net), out_channels=(HDIM,))
        # fused disparity-feature / mask-feature head
        dfeat_in, mfeat_in = fused_conv(net, params['head1'], epilogue='relu',
                                        out_channels=(32, 32))
        disp = fused_conv(dfeat_in, params['disp2'], epilogue='add',
                          extras=(disp,), out_channels=(1,))
        # convex upsampling (liif_out + context_upsample stand-in): mask conv,
        # softmax over 9 neighbors and weighted sum fused in one kernel.
        dpatch = disp_neighbors(disp * (4.0 * scale))
        up = fused_conv(mfeat_in, params['mask2'], epilogue='upsample',
                        extras=(dpatch,), out_channels=(UPF * UPF,))
        disp_preds.append(rearrange_up(up))
    return disp_preds


# ------------------------------- main ----------------------------------------
if __name__ == "__main__":
    key = jax.random.PRNGKey(0)
    k1, k2, k3 = jax.random.split(key, 3)
    image1 = jax.random.uniform(k1, (2, 3, 16, 16), jnp.float32, 0.0, 255.0)
    image2 = jax.random.uniform(k2, (2, 3, 16, 16), jnp.float32, 0.0, 255.0)
    params = init_params(k3)

    preds = raft_stereo_forward(params, image1, image2, iters=2, scale=1.0)
    preds = jax.block_until_ready(preds)
    assert len(preds) == 2
    assert preds[-1].shape == (2, 1, 16, 16)
    assert all(bool(jnp.all(jnp.isfinite(p))) for p in preds)
    print("KERNEL_OK")
</pallas_src>

<mosaic_0001>
module attributes {stable_mosaic.version = 11 : i64} {
  func.func @_conv_fused_kernel(%arg0: i32, %arg1: memref<1x9x9x12xf32, #tpu.memory_space<vmem>>, %arg2: memref<4x12x128xbf16, #tpu.memory_space<vmem>>, %arg3: memref<1x1x128xf32, #tpu.memory_space<vmem>>, %arg4: memref<1x8x8x16xf32, #tpu.memory_space<vmem>>) attributes {dimension_semantics = [#tpu.dimension_semantics<parallel>], iteration_bounds = array<i64: 2>, scalar_prefetch = 0 : i64, scratch_operands = 0 : i64, tpu.core_type = #tpu.core_type<tc>, window_params = [{transform_indices = @transform_0, window_bounds = array<i64: 1, 9, 9, 12>}, {pipeline_mode = #tpu.pipeline_mode<synchronous>, transform_indices = @transform_1, window_bounds = array<i64: 4, 12, 128>}, {pipeline_mode = #tpu.pipeline_mode<synchronous>, transform_indices = @transform_2, window_bounds = array<i64: 1, 1, 128>}, {transform_indices = @transform_3, window_bounds = array<i64: 1, 8, 8, 16>}]} {
    %c0 = arith.constant 0 : index
    %c0_0 = arith.constant 0 : index
    %c0_1 = arith.constant 0 : index
    %c0_2 = arith.constant 0 : index
    %0 = vector.load %arg1[%c0, %c0_0, %c0_1, %c0_2] : memref<1x9x9x12xf32, #tpu.memory_space<vmem>>, vector<1x9x9x12xf32>
    %1 = vector.shape_cast %0 : vector<1x9x9x12xf32> to vector<9x9x12xf32>
    %cst = arith.constant 0.00392156886 : f32
    %2 = vector.broadcast %cst : f32 to vector<9x9x12xf32>
    %3 = arith.mulf %1, %2 : vector<9x9x12xf32>
    %cst_3 = arith.constant 2.000000e+00 : f32
    %4 = vector.broadcast %cst_3 : f32 to vector<9x9x12xf32>
    %5 = arith.mulf %4, %3 : vector<9x9x12xf32>
    %cst_4 = arith.constant 1.000000e+00 : f32
    %6 = vector.broadcast %cst_4 : f32 to vector<9x9x12xf32>
    %7 = arith.subf %5, %6 : vector<9x9x12xf32>
    %8 = arith.truncf %7 : vector<9x9x12xf32> to vector<9x9x12xbf16>
    %cst_5 = arith.constant 0.000000e+00 : f32
    %9 = vector.broadcast %cst_5 : f32 to vector<8x8x128xf32>
    %10 = vector.extract_strided_slice %8 {offsets = [0, 0, 0], sizes = [8, 8, 12], strides = [1, 1, 1]} : vector<9x9x12xbf16> to vector<8x8x12xbf16>
    %c0_6 = arith.constant 0 : index
    %c0_7 = arith.constant 0 : index
    %c0_8 = arith.constant 0 : index
    %11 = vector.load %arg2[%c0_6, %c0_7, %c0_8] : memref<4x12x128xbf16, #tpu.memory_space<vmem>>, vector<1x12x128xbf16>
    %12 = vector.shape_cast %11 : vector<1x12x128xbf16> to vector<12x128xbf16>
    %13 = vector.shape_cast %12 : vector<12x128xbf16> to vector<1x12x128xbf16>
    %14 = vector.broadcast %13 : vector<1x12x128xbf16> to vector<8x12x128xbf16>
    "tpu.trace_start"() <{level = 10 : i32, message = "hwc,hcn->hwn"}> : () -> ()
    %cst_9 = arith.constant dense<0.000000e+00> : vector<8x8x128xf32>
    %15 = tpu.matmul %10, %14, %cst_9 {dimension_numbers = #tpu.dot_dimension_numbers<[2], [1], [1], [2], [0, 0, 0, 1, 1, 2], [0], [0]>} : vector<8x8x12xbf16>, vector<8x12x128xbf16>, vector<8x8x128xf32> -> vector<8x8x128xf32>
    "tpu.trace_stop"() : () -> ()
    %16 = arith.addf %9, %15 : vector<8x8x128xf32>
    %17 = vector.extract_strided_slice %8 {offsets = [0, 1, 0], sizes = [8, 8, 12], strides = [1, 1, 1]} : vector<9x9x12xbf16> to vector<8x8x12xbf16>
    %c1 = arith.constant 1 : index
    %c0_10 = arith.constant 0 : index
    %c0_11 = arith.constant 0 : index
    %18 = vector.load %arg2[%c1, %c0_10, %c0_11] : memref<4x12x128xbf16, #tpu.memory_space<vmem>>, vector<1x12x128xbf16>
    %19 = vector.shape_cast %18 : vector<1x12x128xbf16> to vector<12x128xbf16>
    %20 = vector.shape_cast %19 : vector<12x128xbf16> to vector<1x12x128xbf16>
    %21 = vector.broadcast %20 : vector<1x12x128xbf16> to vector<8x12x128xbf16>
    "tpu.trace_start"() <{level = 10 : i32, message = "hwc,hcn->hwn"}> : () -> ()
    %cst_12 = arith.constant dense<0.000000e+00> : vector<8x8x128xf32>
    %22 = tpu.matmul %17, %21, %cst_12 {dimension_numbers = #tpu.dot_dimension_numbers<[2], [1], [1], [2], [0, 0, 0, 1, 1, 2], [0], [0]>} : vector<8x8x12xbf16>, vector<8x12x128xbf16>, vector<8x8x128xf32> -> vector<8x8x128xf32>
    "tpu.trace_stop"() : () -> ()
    %23 = arith.addf %16, %22 : vector<8x8x128xf32>
    %24 = vector.extract_strided_slice %8 {offsets = [1, 0, 0], sizes = [8, 8, 12], strides = [1, 1, 1]} : vector<9x9x12xbf16> to vector<8x8x12xbf16>
    %c2 = arith.constant 2 : index
    %c0_13 = arith.constant 0 : index
    %c0_14 = arith.constant 0 : index
    %25 = vector.load %arg2[%c2, %c0_13, %c0_14] : memref<4x12x128xbf16, #tpu.memory_space<vmem>>, vector<1x12x128xbf16>
    %26 = vector.shape_cast %25 : vector<1x12x128xbf16> to vector<12x128xbf16>
    %27 = vector.shape_cast %26 : vector<12x128xbf16> to vector<1x12x128xbf16>
    %28 = vector.broadcast %27 : vector<1x12x128xbf16> to vector<8x12x128xbf16>
    "tpu.trace_start"() <{level = 10 : i32, message = "hwc,hcn->hwn"}> : () -> ()
    %cst_15 = arith.constant dense<0.000000e+00> : vector<8x8x128xf32>
    %29 = tpu.matmul %24, %28, %cst_15 {dimension_numbers = #tpu.dot_dimension_numbers<[2], [1], [1], [2], [0, 0, 0, 1, 1, 2], [0], [0]>} : vector<8x8x12xbf16>, vector<8x12x128xbf16>, vector<8x8x128xf32> -> vector<8x8x128xf32>
    "tpu.trace_stop"() : () -> ()
    %30 = arith.addf %23, %29 : vector<8x8x128xf32>
    %31 = vector.extract_strided_slice %8 {offsets = [1, 1, 0], sizes = [8, 8, 12], strides = [1, 1, 1]} : vector<9x9x12xbf16> to vector<8x8x12xbf16>
    %c3 = arith.constant 3 : index
    %c0_16 = arith.constant 0 : index
    %c0_17 = arith.constant 0 : index
    %32 = vector.load %arg2[%c3, %c0_16, %c0_17] : memref<4x12x128xbf16, #tpu.memory_space<vmem>>, vector<1x12x128xbf16>
    %33 = vector.shape_cast %32 : vector<1x12x128xbf16> to vector<12x128xbf16>
    %34 = vector.shape_cast %33 : vector<12x128xbf16> to vector<1x12x128xbf16>
    %35 = vector.broadcast %34 : vector<1x12x128xbf16> to vector<8x12x128xbf16>
    "tpu.trace_start"() <{level = 10 : i32, message = "hwc,hcn->hwn"}> : () -> ()
    %cst_18 = arith.constant dense<0.000000e+00> : vector<8x8x128xf32>
    %36 = tpu.matmul %31, %35, %cst_18 {dimension_numbers = #tpu.dot_dimension_numbers<[2], [1], [1], [2], [0, 0, 0, 1, 1, 2], [0], [0]>} : vector<8x8x12xbf16>, vector<8x12x128xbf16>, vector<8x8x128xf32> -> vector<8x8x128xf32>
    "tpu.trace_stop"() : () -> ()
    %37 = arith.addf %30, %36 : vector<8x8x128xf32>
    %c0_19 = arith.constant 0 : index
    %c0_20 = arith.constant 0 : index
    %c0_21 = arith.constant 0 : index
    %38 = vector.load %arg3[%c0_19, %c0_20, %c0_21] : memref<1x1x128xf32, #tpu.memory_space<vmem>>, vector<1x1x128xf32>
    %39 = vector.broadcast %38 : vector<1x1x128xf32> to vector<8x8x128xf32>
    %40 = arith.addf %37, %39 : vector<8x8x128xf32>
    %41 = vector.extract_strided_slice %40 {offsets = [0, 0, 0], sizes = [8, 8, 16], strides = [1, 1, 1]} : vector<8x8x128xf32> to vector<8x8x16xf32>
    %cst_22 = arith.constant dense<0.000000e+00> : vector<8x16xf32>
    %42 = vector.multi_reduction <add>, %41, %cst_22 [1] : vector<8x8x16xf32> to vector<8x16xf32>
    %43 = vector.shape_cast %42 : vector<8x16xf32> to vector<8x1x16xf32>
    %cst_23 = arith.constant 8.000000e+00 : f32
    %44 = vector.broadcast %cst_23 : f32 to vector<8x1x16xf32>
    %45 = arith.divf %43, %44 : vector<8x1x16xf32>
    %cst_24 = arith.constant dense<0.000000e+00> : vector<1x16xf32>
    %46 = vector.multi_reduction <add>, %45, %cst_24 [0] : vector<8x1x16xf32> to vector<1x16xf32>
    %47 = vector.shape_cast %46 : vector<1x16xf32> to vector<1x1x16xf32>
    %cst_25 = arith.constant 8.000000e+00 : f32
    %48 = vector.broadcast %cst_25 : f32 to vector<1x1x16xf32>
    %49 = arith.divf %47, %48 : vector<1x1x16xf32>
    %50 = vector.broadcast %49 : vector<1x1x16xf32> to vector<8x8x16xf32>
    %51 = arith.subf %41, %50 : vector<8x8x16xf32>
    %52 = arith.mulf %51, %51 : vector<8x8x16xf32>
    %cst_26 = arith.constant dense<0.000000e+00> : vector<8x16xf32>
    %53 = vector.multi_reduction <add>, %52, %cst_26 [1] : vector<8x8x16xf32> to vector<8x16xf32>
    %54 = vector.shape_cast %53 : vector<8x16xf32> to vector<8x1x16xf32>
    %cst_27 = arith.constant 8.000000e+00 : f32
    %55 = vector.broadcast %cst_27 : f32 to vector<8x1x16xf32>
    %56 = arith.divf %54, %55 : vector<8x1x16xf32>
    %cst_28 = arith.constant dense<0.000000e+00> : vector<1x16xf32>
    %57 = vector.multi_reduction <add>, %56, %cst_28 [0] : vector<8x1x16xf32> to vector<1x16xf32>
    %58 = vector.shape_cast %57 : vector<1x16xf32> to vector<1x1x16xf32>
    %cst_29 = arith.constant 8.000000e+00 : f32
    %59 = vector.broadcast %cst_29 : f32 to vector<1x1x16xf32>
    %60 = arith.divf %58, %59 : vector<1x1x16xf32>
    %61 = vector.broadcast %49 : vector<1x1x16xf32> to vector<8x8x16xf32>
    %62 = arith.subf %41, %61 : vector<8x8x16xf32>
    %cst_30 = arith.constant 9.99999974E-6 : f32
    %63 = vector.broadcast %cst_30 : f32 to vector<1x1x16xf32>
    %64 = arith.addf %60, %63 : vector<1x1x16xf32>
    %65 = math.rsqrt %64 : vector<1x1x16xf32>
    %66 = vector.broadcast %65 : vector<1x1x16xf32> to vector<8x8x16xf32>
    %67 = arith.mulf %62, %66 : vector<8x8x16xf32>
    %cst_31 = arith.constant 0.000000e+00 : f32
    %68 = vector.broadcast %cst_31 : f32 to vector<8x8x16xf32>
    %69 = arith.maximumf %67, %68 : vector<8x8x16xf32>
    %c0_32 = arith.constant 0 : index
    %c0_33 = arith.constant 0 : index
    %c0_34 = arith.constant 0 : index
    %c0_35 = arith.constant 0 : index
    %70 = vector.load %arg4[%c0_32, %c0_33, %c0_34, %c0_35] : memref<1x8x8x16xf32, #tpu.memory_space<vmem>>, vector<1x8x8x16xf32>
    %71 = vector.shape_cast %70 : vector<1x8x8x16xf32> to vector<8x8x16xf32>
    %72 = vector.shape_cast %69 : vector<8x8x16xf32> to vector<1x8x8x16xf32>
    tpu.vector_store %arg4[%c0_32, %c0_33, %c0_34, %c0_35], %72 {strides = array<i32>} : memref<1x8x8x16xf32, #tpu.memory_space<vmem>>, vector<1x8x8x16xf32>,
    return
  }
  func.func @transform_0(%arg0: i32) -> (i32, i32, i32, i32) {
    %c0_i32 = arith.constant 0 : i32
    %c0_i32_0 = arith.constant 0 : i32
    %c0_i32_1 = arith.constant 0 : i32
    %c0_i32_2 = arith.constant 0 : i32
    return %arg0, %c0_i32, %c0_i32_0, %c0_i32_1 : i32, i32, i32, i32
  }
  func.func @transform_1(%arg0: i32) -> (i32, i32, i32) {
    %c0_i32 = arith.constant 0 : i32
    %c0_i32_0 = arith.constant 0 : i32
    %c0_i32_1 = arith.constant 0 : i32
    %c0_i32_2 = arith.constant 0 : i32
    return %c0_i32, %c0_i32_0, %c0_i32_1 : i32, i32, i32
  }
  func.func @transform_2(%arg0: i32) -> (i32, i32, i32) {
    %c0_i32 = arith.constant 0 : i32
    %c0_i32_0 = arith.constant 0 : i32
    %c0_i32_1 = arith.constant 0 : i32
    %c0_i32_2 = arith.constant 0 : i32
    return %c0_i32, %c0_i32_0, %c0_i32_1 : i32, i32, i32
  }
  func.func @transform_3(%arg0: i32) -> (i32, i32, i32, i32) {
    %c0_i32 = arith.constant 0 : i32
    %c0_i32_0 = arith.constant 0 : i32
    %c0_i32_1 = arith.constant 0 : i32
    %c0_i32_2 = arith.constant 0 : i32
    return %arg0, %c0_i32, %c0_i32_0, %c0_i32_1 : i32, i32, i32, i32
  }
}

</mosaic_0001>

<llo_original>
// kernel: tpu_custom_call.1
$region0: #{tpu_custom_call.1}
  #allocation0 [shape = 'u32[]', space=smem, size = 0x4, offset = 0x4, fixed_abs, tag = 'smem constant byte address 0x4 - core index']
  #allocation1 [shape = 'u32[72,128]{1,0:T(1,128)}', space=vmem, size = 0x9000, scoped, tag = 'internal scratch']
  %s0 = inlined_call_operand.vmem [shape: f32[2,9,9,12], index: 0, kind: input, shape index: {}]
  %s1 = inlined_call_operand.vmem [shape: bf16[4,12,128], index: 1, kind: input, shape index: {}]
  %s2 = inlined_call_operand.vmem [shape: f32[1,1,128], index: 2, kind: input, shape index: {}]
  %s3 = inlined_call_operand.hbm [shape: f32[2,8,8,16], index: 3, kind: output, shape index: {}]
  %s4 = sld [smem:[#allocation0]]
  $region45: #{tpu_custom_call.1} parent=0
    _
  %s6 = ssub.s32 1, %s4
  %s7 = scalar_select 0, %s6, %s4
  $region1: #{tpu_custom_call.1} parent=0
    #allocation2 [shape = 'u8[65536]{0}', space=vmem, size = 0x10000, scoped, tag = 'output window, operand 0']
    #allocation3 [shape = 's32[2]{0}', space=sflag, size = 0x8, scoped, tag = 'scoped memory for tpu_custom_call.1']
    %8 = vsyncpa [#allocation3], 0
    %s9 = scalar_lea.sflag [#allocation3], 1
    %10 = vsyncpa %s9, 0
    loop: start=0, step=1, limit=4
    $region2: #{tpu_custom_call.1} parent=1 // loop_pre_header
      _
    $region3: #{tpu_custom_call.1} parent=1 // loop_header
      %s12 = sphi 0, %s16
      %p13 = scmp.ge.s32.totalorder %s12, 4
      %s22 = sphi 0, %s24
      %s25 = sphi 0, %s22
      %s26 = sphi 0, %s25
      %s42 = sphi 0, %s26
      %s46 = sphi 0, %s46
      %s48 = sphi 0, %s46
      %s49 = sphi 0, %s48
      %s63 = sphi 0, %s49
      %s67 = sphi 0, %s67
      %s69 = sphi 0, %s67
      %s70 = sphi 0, %s69
      %s84 = sphi 0, %s70
      %s90 = sphi 0, %s92
      %s93 = sphi 0, %s90
      %s94 = sphi 0, %s93
      %s110 = sphi 0, %s94
    $region4: #{tpu_custom_call.1} parent=1 // loop_header_branch
      %15 = sbr.rel (%p13) target = $region8
    $region5: #{tpu_custom_call.1} parent=1 // loop_body
      %s17 = ssub.s32 %s12, 1
      %s18 = ssub.s32 %s12, 2
      %s19 = sadd.s32 %s12, 1
      %s20 = ssub.s32 %s12, %s19
      %p21 = scmp.eq.s32.totalorder %s20, 0
      %s23 = sadd.s32 %s22, 1
      %s24 = scalar_select %p21, %s22, %s23
      %p27 = pneg %p21
      %p28 = scmp.eq.s32.totalorder %s12, 1
      %p29 = por %p27, %p28
      %p30 = scmp.ne.s32.totalorder %s22, %s25
      %p31 = scmp.eq.s32.totalorder %s12, 0
      %p32 = por %p30, %p31
      %p33 = scmp.ne.s32.totalorder %s22, %s25
      %p34 = scmp.eq.s32.totalorder %s17, 1
      %p35 = por %p33, %p34
      %p36 = scmp.ne.s32.totalorder %s25, %s26
      %p37 = scmp.eq.s32.totalorder %s17, 0
      %p38 = por %p36, %p37
      %p39 = scmp.ne.s32.totalorder %s25, %s26
      %p40 = scmp.eq.s32.totalorder %s18, 1
      %p41 = por %p39, %p40
      %p43 = scmp.ne.s32.totalorder %s26, %s42
      %p44 = scmp.eq.s32.totalorder %s18, 0
      %p45 = por %p43, %p44
      %s47 = sadd.s32 %s46, 1
      %p50 = scmp.eq.s32.totalorder %s12, 1
      %p51 = scmp.ne.s32.totalorder %s46, %s48
      %p52 = scmp.eq.s32.totalorder %s12, 0
      %p53 = por %p51, %p52
      %p54 = scmp.ne.s32.totalorder %s46, %s48
      %p55 = scmp.eq.s32.totalorder %s17, 1
      %p56 = por %p54, %p55
      %p57 = scmp.ne.s32.totalorder %s48, %s49
      %p58 = scmp.eq.s32.totalorder %s17, 0
      %p59 = por %p57, %p58
      %p60 = scmp.ne.s32.totalorder %s48, %s49
      %p61 = scmp.eq.s32.totalorder %s18, 1
      %p62 = por %p60, %p61
      %p64 = scmp.ne.s32.totalorder %s49, %s63
      %p65 = scmp.eq.s32.totalorder %s18, 0
      %p66 = por %p64, %p65
      %s68 = sadd.s32 %s67, 1
      %p71 = scmp.eq.s32.totalorder %s12, 1
      %p72 = scmp.ne.s32.totalorder %s67, %s69
      %p73 = scmp.eq.s32.totalorder %s12, 0
      %p74 = por %p72, %p73
      %p75 = scmp.ne.s32.totalorder %s67, %s69
      %p76 = scmp.eq.s32.totalorder %s17, 1
      %p77 = por %p75, %p76
      %p78 = scmp.ne.s32.totalorder %s69, %s70
      %p79 = scmp.eq.s32.totalorder %s17, 0
      %p80 = por %p78, %p79
      %p81 = scmp.ne.s32.totalorder %s69, %s70
      %p82 = scmp.eq.s32.totalorder %s18, 1
      %p83 = por %p81, %p82
      %p85 = scmp.ne.s32.totalorder %s70, %s84
      %p86 = scmp.eq.s32.totalorder %s18, 0
      %p87 = por %p85, %p86
      %s88 = ssub.s32 %s12, %s19
      %p89 = scmp.eq.s32.totalorder %s88, 0
      %s91 = sadd.s32 %s90, 1
      %s92 = scalar_select %p89, %s90, %s91
      %p95 = pneg %p89
      %p96 = scmp.eq.s32.totalorder %s12, 1
      %p97 = por %p95, %p96
      %p98 = scmp.ne.s32.totalorder %s90, %s93
      %p99 = scmp.eq.s32.totalorder %s12, 0
      %p100 = por %p98, %p99
      %p101 = scmp.ne.s32.totalorder %s90, %s93
      %p102 = scmp.eq.s32.totalorder %s17, 1
      %p103 = por %p101, %p102
      %p104 = scmp.ne.s32.totalorder %s93, %s94
      %p105 = scmp.eq.s32.totalorder %s17, 0
      %p106 = por %p104, %p105
      %p107 = scmp.ne.s32.totalorder %s93, %s94
      %p108 = scmp.eq.s32.totalorder %s18, 1
      %p109 = por %p107, %p108
      %p111 = scmp.ne.s32.totalorder %s94, %s110
      %p112 = scmp.eq.s32.totalorder %s18, 0
      %p113 = por %p111, %p112
      %p114 = scmp.le.s32.totalorder 1, %s12
      %p115 = scmp.lt.s32.totalorder %s12, 3
      %p116 = pnand %p114, %p115
      %p117 = pneg %p116
      // Predicated region
      $region9: #{tpu_custom_call.1} parent=5 // pred_check
        _
      $region10: #{tpu_custom_call.1} parent=5 // pred_check_branch
        %119 = sbr.rel (%p116) target = $region12
      $region11: #{tpu_custom_call.1} parent=5 // pred_region
        %s120 = ssub.s32 %s12, 1
        // Predicated region
        $region13: #{tpu_custom_call.1} parent=11 // pred_check
          %p121 = pneg %p59
        $region14: #{tpu_custom_call.1} parent=11 // pred_check_branch
          %123 = sbr.rel (%p121) target = $region16
        $region15: #{tpu_custom_call.1} parent=11 // pred_region
          _
        $region16: #{tpu_custom_call.1} parent=11 // pred_fallthru
          _
        // Predicated region
        $region17: #{tpu_custom_call.1} parent=11 // pred_check
          %p124 = pneg %p80
        $region18: #{tpu_custom_call.1} parent=11 // pred_check_branch
          %126 = sbr.rel (%p124) target = $region20
        $region19: #{tpu_custom_call.1} parent=11 // pred_region
          _
        $region20: #{tpu_custom_call.1} parent=11 // pred_fallthru
          _
      $region12: #{tpu_custom_call.1} parent=5 // pred_fallthru
        _
      %p127 = scmp.lt.s32.totalorder %s12, 2
      // Predicated region
      $region21: #{tpu_custom_call.1} parent=5 // pred_check
        %p128 = pneg %p127
      $region22: #{tpu_custom_call.1} parent=5 // pred_check_branch
        %130 = sbr.rel (%p128) target = $region24
      $region23: #{tpu_custom_call.1} parent=5 // pred_region
        // Predicated region
        $region25: #{tpu_custom_call.1} parent=23 // pred_check
          %p131 = pneg %p32
        $region26: #{tpu_custom_call.1} parent=23 // pred_check_branch
          %133 = sbr.rel (%p131) target = $region28
        $region27: #{tpu_custom_call.1} parent=23 // pred_region
          %p134 = scmp.lt.s32.totalorder %s12, 1
          %s135 = scalar_select %p134, %s12, 1
          %s136 = smul.addr %s135, 18
          %s137 = smul.addr %s136, 8
          %s138 = scalar_lea.vmem %s0, %s137
        $region28: #{tpu_custom_call.1} parent=23 // pred_fallthru
          _
      $region24: #{tpu_custom_call.1} parent=5 // pred_fallthru
        _
      %p139 = scmp.le.s32.totalorder 1, %s12
      %p140 = scmp.lt.s32.totalorder %s12, 3
      %p141 = pnand %p139, %p140
      %p142 = pneg %p141
      // Predicated region
      $region29: #{tpu_custom_call.1} parent=5 // pred_check
        _
      $region30: #{tpu_custom_call.1} parent=5 // pred_check_branch
        %144 = sbr.rel (%p141) target = $region32
      $region31: #{tpu_custom_call.1} parent=5 // pred_region
        %s145 = ssub.s32 %s12, 1
        %p146 = scmp.lt.s32.totalorder %s17, 1
        %s147 = scalar_select %p146, %s17, 1
        %s148 = smul.addr %s147, 18
        %s149 = smul.addr %s148, 8
        %s150 = scalar_lea.vmem %s0, %s149
        %p151 = pneg %p38
        %p152 = pneg %p35
        %p153 = pneg %p59
        %p154 = pneg %p56
        %p155 = pneg %p80
        %p156 = pneg %p77
        %p157 = pneg %p106
        %p158 = pneg %p103
        %s159 = sand.u32 %s93, 1
        %s160 = scalar_lea.sflag [#allocation3], %s159
        %s161 = sand.u32 %s93, 1
        %s162 = smul.addr %s161, 64
        %s163 = scalar_lea.vmem [#allocation2], %s162
        %p164 = scmp.lt.s32.totalorder %s17, 1
        %s165 = scalar_select %p164, %s17, 1
        %s166 = smul.addr %s165, 18
        %s167 = smul.addr %s166, 8
        %s168 = scalar_lea.vmem %s0, %s167
        %v170 = vld [vmem:[%s168] sm:$0xff]
        %v171 = vld [vmem:[%s168 + $0x8] sm:$0x1]
        %v172 = vld [vmem:[%s168 + $0x10] sm:$0xff]
        %v173 = vld [vmem:[%s168 + $0x18] sm:$0x1]
        %v174 = vld [vmem:[%s168 + $0x20] sm:$0xff]
        %v175 = vld [vmem:[%s168 + $0x28] sm:$0x1]
        %v176 = vld [vmem:[%s168 + $0x30] sm:$0xff]
        %v177 = vld [vmem:[%s168 + $0x38] sm:$0x1]
        %v178 = vld [vmem:[%s168 + $0x40] sm:$0xff]
        %v179 = vld [vmem:[%s168 + $0x48] sm:$0x1]
        %v180 = vld [vmem:[%s168 + $0x50] sm:$0xff]
        %v181 = vld [vmem:[%s168 + $0x58] sm:$0x1]
        %v182 = vld [vmem:[%s168 + $0x60] sm:$0xff]
        %v183 = vld [vmem:[%s168 + $0x68] sm:$0x1]
        %v184 = vld [vmem:[%s168 + $0x70] sm:$0xff]
        %v185 = vld [vmem:[%s168 + $0x78] sm:$0x1]
        %v186 = vld [vmem:[%s168 + $0x80] sm:$0xff]
        %v187 = vld [vmem:[%s168 + $0x88] sm:$0x1]
        %v188 = vmul.f32 %v170, 0.003921569
        %v189 = vmul.f32 %v171, 0.003921569
        %v190 = vmul.f32 %v172, 0.003921569
        %v191 = vmul.f32 %v173, 0.003921569
        %v192 = vmul.f32 %v174, 0.003921569
        %v193 = vmul.f32 %v175, 0.003921569
        %v194 = vmul.f32 %v176, 0.003921569
        %v195 = vmul.f32 %v177, 0.003921569
        %v196 = vmul.f32 %v178, 0.003921569
        %v197 = vmul.f32 %v179, 0.003921569
        %v198 = vmul.f32 %v180, 0.003921569
        %v199 = vmul.f32 %v181, 0.003921569
        %v200 = vmul.f32 %v182, 0.003921569
        %v201 = vmul.f32 %v183, 0.003921569
        %v202 = vmul.f32 %v184, 0.003921569
        %v203 = vmul.f32 %v185, 0.003921569
        %v204 = vmul.f32 %v186, 0.003921569
        %v205 = vmul.f32 %v187, 0.003921569
        %v206 = vmul.f32 %v188, 2.0
        %v207 = vmul.f32 %v189, 2.0
        %v208 = vmul.f32 %v190, 2.0
        %v209 = vmul.f32 %v191, 2.0
        %v210 = vmul.f32 %v192, 2.0
        %v211 = vmul.f32 %v193, 2.0
        %v212 = vmul.f32 %v194, 2.0
        %v213 = vmul.f32 %v195, 2.0
        %v214 = vmul.f32 %v196, 2.0
        %v215 = vmul.f32 %v197, 2.0
        %v216 = vmul.f32 %v198, 2.0
        %v217 = vmul.f32 %v199, 2.0
        %v218 = vmul.f32 %v200, 2.0
        %v219 = vmul.f32 %v201, 2.0
        %v220 = vmul.f32 %v202, 2.0
        %v221 = vmul.f32 %v203, 2.0
        %v222 = vmul.f32 %v204, 2.0
        %v223 = vmul.f32 %v205, 2.0
        %v224 = vsub.f32 %v206, 1.0
        %v225 = vsub.f32 %v207, 1.0
        %v226 = vsub.f32 %v208, 1.0
        %v227 = vsub.f32 %v209, 1.0
        %v228 = vsub.f32 %v210, 1.0
        %v229 = vsub.f32 %v211, 1.0
        %v230 = vsub.f32 %v212, 1.0
        %v231 = vsub.f32 %v213, 1.0
        %v232 = vsub.f32 %v214, 1.0
        %v233 = vsub.f32 %v215, 1.0
        %v234 = vsub.f32 %v216, 1.0
        %v235 = vsub.f32 %v217, 1.0
        %v236 = vsub.f32 %v218, 1.0
        %v237 = vsub.f32 %v219, 1.0
        %v238 = vsub.f32 %v220, 1.0
        %v239 = vsub.f32 %v221, 1.0
        %v240 = vsub.f32 %v222, 1.0
        %v241 = vsub.f32 %v223, 1.0
        %v242 = vpack.c.bf16 %v224, %v224
        %v243 = vpack.c.bf16 %v225, %v225
        %v244 = vpack.c.bf16 %v226, %v226
        %v245 = vpack.c.bf16 %v227, %v227
        %v246 = vpack.c.bf16 %v228, %v228
        %v247 = vpack.c.bf16 %v229, %v229
        %v248 = vpack.c.bf16 %v230, %v230
        %v249 = vpack.c.bf16 %v231, %v231
        %v250 = vpack.c.bf16 %v232, %v232
        %v251 = vpack.c.bf16 %v233, %v233
        %v252 = vpack.c.bf16 %v234, %v234
        %v253 = vpack.c.bf16 %v235, %v235
        %v254 = vpack.c.bf16 %v236, %v236
        %v255 = vpack.c.bf16 %v237, %v237
        %v256 = vpack.c.bf16 %v238, %v238
        %v257 = vpack.c.bf16 %v239, %v239
        %v258 = vpack.c.bf16 %v240, %v240
        %v259 = vpack.c.bf16 %v241, %v241
        %v260 = vld [vmem:[%s1] sm:$0xf]
        %v261 = vld [vmem:[%s1 + $0x4] sm:$0x3]
        %s262 = scalar_lea.vmem %s1, 8
        %v263 = vld [vmem:[%s262] sm:$0xf]
        %v264 = vld [vmem:[%s262 + $0x4] sm:$0x3]
        %v267 = vunpack.c.l.b16 %v242
        %v268 = vunpack.c.l.b16 %v243
        %v269 = vpack.c.b16 %v268, %v267
        %v271 = vshrl.u32 %v269, 16
        %v273 = vshll.u32 %v269, 16
        %v275 = vrot.slane %v273, 1
        %v276 = vor.u32 %v271, %v275
        %v279 = vunpack.c.l.b16 %v263
        %v280 = vunpack.c.l.b16 %v264
        %v281 = vpack.c.b16 %v280, %v279
        %vm282 = vcmask 97280
        %v284 = vsel %vm282, %v276, 0
        %vm286 = vcmask 1045504
        %v288 = vsel %vm286, %v281, 0
        %290 = vmatpush.bf16.msra.mxu0 0
        %291 = vmatpush.bf16.msra.mxu0 0
        %292 = vmatpush.bf16.msra.mxu0 0
        %293 = vmatpush.bf16.msra.mxu0 0
        %294 = vmatpush.bf16.msra.mxu0 0
        %295 = vmatpush.bf16.msra.mxu0 0
        %296 = vmatpush.bf16.msra.mxu0 0
        %297 = vmatpush.bf16.msra.mxu0 %v288
        %298 = vmatmul.bf16.gmra.mxu0 %v284
        %v299 = vpop.f32.mrf.mxu0
        %v300 = vadd.f32 0.0, %v299
        %v301 = vpop.f32.mrf.mxu0
        %302 = vdwg.mxu0
        %v305 = vunpack.c.l.b16 %v244
        %v306 = vunpack.c.l.b16 %v245
        %v307 = vpack.c.b16 %v306, %v305
        %v309 = vshrl.u32 %v307, 16
        %v311 = vshll.u32 %v307, 16
        %v313 = vrot.slane %v311, 1
        %v314 = vor.u32 %v309, %v313
        %v316 = vsel %vm282, %v314, 0
        %318 = vmatpush.bf16.msra.mxu0 0
        %319 = vmatpush.bf16.msra.mxu0 0
        %320 = vmatpush.bf16.msra.mxu0 0
        %321 = vmatpush.bf16.msra.mxu0 0
        %322 = vmatpush.bf16.msra.mxu0 0
        %323 = vmatpush.bf16.msra.mxu0 0
        %324 = vmatpush.bf16.msra.mxu0 0
        %325 = vmatpush.bf16.msra.mxu0 %v288
        %326 = vmatmul.bf16.gmra.mxu0 %v316
        %v327 = vpop.f32.mrf.mxu0
        %v328 = vadd.f32 0.0, %v327
        %v329 = vpop.f32.mrf.mxu0
        %330 = vdwg.mxu0
        %v333 = vunpack.c.l.b16 %v246
        %v334 = vunpack.c.l.b16 %v247
        %v335 = vpack.c.b16 %v334, %v333
        %v337 = vshrl.u32 %v335, 16
        %v339 = vshll.u32 %v335, 16
        %v341 = vrot.slane %v339, 1
        %v342 = vor.u32 %v337, %v341
        %v344 = vsel %vm282, %v342, 0
        %346 = vmatpush.bf16.msra.mxu0 0
        %347 = vmatpush.bf16.msra.mxu0 0
        %348 = vmatpush.bf16.msra.mxu0 0
        %349 = vmatpush.bf16.msra.mxu0 0
        %350 = vmatpush.bf16.msra.mxu0 0
        %351 = vmatpush.bf16.msra.mxu0 0
        %352 = vmatpush.bf16.msra.mxu0 0
        %353 = vmatpush.bf16.msra.mxu0 %v288
        %354 = vmatmul.bf16.gmra.mxu0 %v344
        %v355 = vpop.f32.mrf.mxu0
        %v356 = vadd.f32 0.0, %v355
        %v357 = vpop.f32.mrf.mxu0
        %358 = vdwg.mxu0
        %v361 = vunpack.c.l.b16 %v248
        %v362 = vunpack.c.l.b16 %v249
        %v363 = vpack.c.b16 %v362, %v361
        %v365 = vshrl.u32 %v363, 16
        %v367 = vshll.u32 %v363, 16
        %v369 = vrot.slane %v367, 1
        %v370 = vor.u32 %v365, %v369
        %v372 = vsel %vm282, %v370, 0
        %374 = vmatpush.bf16.msra.mxu0 0
        %375 = vmatpush.bf16.msra.mxu0 0
        %376 = vmatpush.bf16.msra.mxu0 0
        %377 = vmatpush.bf16.msra.mxu0 0
        %378 = vmatpush.bf16.msra.mxu0 0
        %379 = vmatpush.bf16.msra.mxu0 0
        %380 = vmatpush.bf16.msra.mxu0 0
        %381 = vmatpush.bf16.msra.mxu0 %v288
        %382 = vmatmul.bf16.gmra.mxu0 %v372
        %v383 = vpop.f32.mrf.mxu0
        %v384 = vadd.f32 0.0, %v383
        %v385 = vpop.f32.mrf.mxu0
        %386 = vdwg.mxu0
        %v389 = vunpack.c.l.b16 %v250
        %v390 = vunpack.c.l.b16 %v251
        %v391 = vpack.c.b16 %v390, %v389
        %v393 = vshrl.u32 %v391, 16
        %v395 = vshll.u32 %v391, 16
        %v397 = vrot.slane %v395, 1
        %v398 = vor.u32 %v393, %v397
        %v400 = vsel %vm282, %v398, 0
        %402 = vmatpush.bf16.msra.mxu0 0
        %403 = vmatpush.bf16.msra.mxu0 0
        %404 = vmatpush.bf16.msra.mxu0 0
        %405 = vmatpush.bf16.msra.mxu0 0
        %406 = vmatpush.bf16.msra.mxu0 0
        %407 = vmatpush.bf16.msra.mxu0 0
        %408 = vmatpush.bf16.msra.mxu0 0
        %409 = vmatpush.bf16.msra.mxu0 %v288
        %410 = vmatmul.bf16.gmra.mxu0 %v400
        %v411 = vpop.f32.mrf.mxu0
        %v412 = vadd.f32 0.0, %v411
        %v413 = vpop.f32.mrf.mxu0
        %414 = vdwg.mxu0
        %v417 = vunpack.c.l.b16 %v252
        %v418 = vunpack.c.l.b16 %v253
        %v419 = vpack.c.b16 %v418, %v417
        %v421 = vshrl.u32 %v419, 16
        %v423 = vshll.u32 %v419, 16
        %v425 = vrot.slane %v423, 1
        %v426 = vor.u32 %v421, %v425
        %v428 = vsel %vm282, %v426, 0
        %430 = vmatpush.bf16.msra.mxu0 0
        %431 = vmatpush.bf16.msra.mxu0 0
        %432 = vmatpush.bf16.msra.mxu0 0
        %433 = vmatpush.bf16.msra.mxu0 0
        %434 = vmatpush.bf16.msra.mxu0 0
        %435 = vmatpush.bf16.msra.mxu0 0
        %436 = vmatpush.bf16.msra.mxu0 0
        %437 = vmatpush.bf16.msra.mxu0 %v288
        %438 = vmatmul.bf16.gmra.mxu0 %v428
        %v439 = vpop.f32.mrf.mxu0
        %v440 = vadd.f32 0.0, %v439
        %v441 = vpop.f32.mrf.mxu0
        %442 = vdwg.mxu0
        %v445 = vunpack.c.l.b16 %v254
        %v446 = vunpack.c.l.b16 %v255
        %v447 = vpack.c.b16 %v446, %v445
        %v449 = vshrl.u32 %v447, 16
        %v451 = vshll.u32 %v447, 16
        %v453 = vrot.slane %v451, 1
        %v454 = vor.u32 %v449, %v453
        %v456 = vsel %vm282, %v454, 0
        %458 = vmatpush.bf16.msra.mxu0 0
        %459 = vmatpush.bf16.msra.mxu0 0
        %460 = vmatpush.bf16.msra.mxu0 0
        %461 = vmatpush.bf16.msra.mxu0 0
        %462 = vmatpush.bf16.msra.mxu0 0
        %463 = vmatpush.bf16.msra.mxu0 0
        %464 = vmatpush.bf16.msra.mxu0 0
        %465 = vmatpush.bf16.msra.mxu0 %v288
        %466 = vmatmul.bf16.gmra.mxu0 %v456
        %v467 = vpop.f32.mrf.mxu0
        %v468 = vadd.f32 0.0, %v467
        %v469 = vpop.f32.mrf.mxu0
        %470 = vdwg.mxu0
        %v473 = vunpack.c.l.b16 %v256
        %v474 = vunpack.c.l.b16 %v257
        %v475 = vpack.c.b16 %v474, %v473
        %v477 = vshrl.u32 %v475, 16
        %v479 = vshll.u32 %v475, 16
        %v481 = vrot.slane %v479, 1
        %v482 = vor.u32 %v477, %v481
        %v484 = vsel %vm282, %v482, 0
        %486 = vmatpush.bf16.msra.mxu0 0
        %487 = vmatpush.bf16.msra.mxu0 0
        %488 = vmatpush.bf16.msra.mxu0 0
        %489 = vmatpush.bf16.msra.mxu0 0
        %490 = vmatpush.bf16.msra.mxu0 0
        %491 = vmatpush.bf16.msra.mxu0 0
        %492 = vmatpush.bf16.msra.mxu0 0
        %493 = vmatpush.bf16.msra.mxu0 %v288
        %494 = vmatmul.bf16.gmra.mxu0 %v484
        %v495 = vpop.f32.mrf.mxu0
        %v496 = vadd.f32 0.0, %v495
        %v497 = vpop.f32.mrf.mxu0
        %498 = vdwg.mxu0
        %v501 = vunpack.c.l.b16 %v260
        %v502 = vunpack.c.l.b16 %v261
        %v503 = vpack.c.b16 %v502, %v501
        %v505 = vsel %vm282, %v242, 0
        %v508 = vsel %vm286, %v503, 0
        %510 = vmatpush.bf16.msra.mxu0 0
        %511 = vmatpush.bf16.msra.mxu0 0
        %512 = vmatpush.bf16.msra.mxu0 0
        %513 = vmatpush.bf16.msra.mxu0 0
        %514 = vmatpush.bf16.msra.mxu0 0
        %515 = vmatpush.bf16.msra.mxu0 0
        %516 = vmatpush.bf16.msra.mxu0 0
        %517 = vmatpush.bf16.msra.mxu0 %v508
        %518 = vmatmul.bf16.gmra.mxu0 %v505
        %v519 = vpop.f32.mrf.mxu0
        %v520 = vadd.f32 %v300, %v519
        %v521 = vpop.f32.mrf.mxu0
        %522 = vdwg.mxu0
        %v524 = vsel %vm282, %v244, 0
        %526 = vmatpush.bf16.msra.mxu0 0
        %527 = vmatpush.bf16.msra.mxu0 0
        %528 = vmatpush.bf16.msra.mxu0 0
        %529 = vmatpush.bf16.msra.mxu0 0
        %530 = vmatpush.bf16.msra.mxu0 0
        %531 = vmatpush.bf16.msra.mxu0 0
        %532 = vmatpush.bf16.msra.mxu0 0
        %533 = vmatpush.bf16.msra.mxu0 %v508
        %534 = vmatmul.bf16.gmra.mxu0 %v524
        %v535 = vpop.f32.mrf.mxu0
        %v536 = vadd.f32 %v328, %v535
        %v537 = vpop.f32.mrf.mxu0
        %538 = vdwg.mxu0
        %v540 = vsel %vm282, %v246, 0
        %542 = vmatpush.bf16.msra.mxu0 0
        %543 = vmatpush.bf16.msra.mxu0 0
        %544 = vmatpush.bf16.msra.mxu0 0
        %545 = vmatpush.bf16.msra.mxu0 0
        %546 = vmatpush.bf16.msra.mxu0 0
        %547 = vmatpush.bf16.msra.mxu0 0
        %548 = vmatpush.bf16.msra.mxu0 0
        %549 = vmatpush.bf16.msra.mxu0 %v508
        %550 = vmatmul.bf16.gmra.mxu0 %v540
        %v551 = vpop.f32.mrf.mxu0
        %v552 = vadd.f32 %v356, %v551
        %v553 = vpop.f32.mrf.mxu0
        %554 = vdwg.mxu0
        %v556 = vsel %vm282, %v248, 0
        %558 = vmatpush.bf16.msra.mxu0 0
        %559 = vmatpush.bf16.msra.mxu0 0
        %560 = vmatpush.bf16.msra.mxu0 0
        %561 = vmatpush.bf16.msra.mxu0 0
        %562 = vmatpush.bf16.msra.mxu0 0
        %563 = vmatpush.bf16.msra.mxu0 0
        %564 = vmatpush.bf16.msra.mxu0 0
        %565 = vmatpush.bf16.msra.mxu0 %v508
        %566 = vmatmul.bf16.gmra.mxu0 %v556
        %v567 = vpop.f32.mrf.mxu0
        %v568 = vadd.f32 %v384, %v567
        %v569 = vpop.f32.mrf.mxu0
        %570 = vdwg.mxu0
        %v572 = vsel %vm282, %v250, 0
        %574 = vmatpush.bf16.msra.mxu0 0
        %575 = vmatpush.bf16.msra.mxu0 0
        %576 = vmatpush.bf16.msra.mxu0 0
        %577 = vmatpush.bf16.msra.mxu0 0
        %578 = vmatpush.bf16.msra.mxu0 0
        %579 = vmatpush.bf16.msra.mxu0 0
        %580 = vmatpush.bf16.msra.mxu0 0
        %581 = vmatpush.bf16.msra.mxu0 %v508
        %582 = vmatmul.bf16.gmra.mxu0 %v572
        %v583 = vpop.f32.mrf.mxu0
        %v584 = vadd.f32 %v412, %v583
        %v585 = vpop.f32.mrf.mxu0
        %586 = vdwg.mxu0
        %v588 = vsel %vm282, %v252, 0
        %590 = vmatpush.bf16.msra.mxu0 0
        %591 = vmatpush.bf16.msra.mxu0 0
        %592 = vmatpush.bf16.msra.mxu0 0
        %593 = vmatpush.bf16.msra.mxu0 0
        %594 = vmatpush.bf16.msra.mxu0 0
        %595 = vmatpush.bf16.msra.mxu0 0
        %596 = vmatpush.bf16.msra.mxu0 0
        %597 = vmatpush.bf16.msra.mxu0 %v508
        %598 = vmatmul.bf16.gmra.mxu0 %v588
        %v599 = vpop.f32.mrf.mxu0
        %v600 = vadd.f32 %v440, %v599
        %v601 = vpop.f32.mrf.mxu0
        %602 = vdwg.mxu0
        %v604 = vsel %vm282, %v254, 0
        %606 = vmatpush.bf16.msra.mxu0 0
        %607 = vmatpush.bf16.msra.mxu0 0
        %608 = vmatpush.bf16.msra.mxu0 0
        %609 = vmatpush.bf16.msra.mxu0 0
        %610 = vmatpush.bf16.msra.mxu0 0
        %611 = vmatpush.bf16.msra.mxu0 0
        %612 = vmatpush.bf16.msra.mxu0 0
        %613 = vmatpush.bf16.msra.mxu0 %v508
        %614 = vmatmul.bf16.gmra.mxu0 %v604
        %v615 = vpop.f32.mrf.mxu0
        %v616 = vadd.f32 %v468, %v615
        %v617 = vpop.f32.mrf.mxu0
        %618 = vdwg.mxu0
        %v620 = vsel %vm282, %v256, 0
        %622 = vmatpush.bf16.msra.mxu0 0
        %623 = vmatpush.bf16.msra.mxu0 0
        %624 = vmatpush.bf16.msra.mxu0 0
        %625 = vmatpush.bf16.msra.mxu0 0
        %626 = vmatpush.bf16.msra.mxu0 0
        %627 = vmatpush.bf16.msra.mxu0 0
        %628 = vmatpush.bf16.msra.mxu0 0
        %629 = vmatpush.bf16.msra.mxu0 %v508
        %630 = vmatmul.bf16.gmra.mxu0 %v620
        %v631 = vpop.f32.mrf.mxu0
        %v632 = vadd.f32 %v496, %v631
        %v633 = vpop.f32.mrf.mxu0
        %634 = vdwg.mxu0
        %s635 = scalar_lea.vmem %s1, 16
        %v636 = vld [vmem:[%s635] sm:$0xf]
        %v637 = vld [vmem:[%s635 + $0x4] sm:$0x3]
        %v640 = vunpack.c.l.b16 %v636
        %v641 = vunpack.c.l.b16 %v637
        %v642 = vpack.c.b16 %v641, %v640
        %v644 = vsel %vm286, %v642, 0
        %646 = vmatpush.bf16.msra.mxu0 0
        %647 = vmatpush.bf16.msra.mxu0 0
        %648 = vmatpush.bf16.msra.mxu0 0
        %649 = vmatpush.bf16.msra.mxu0 0
        %650 = vmatpush.bf16.msra.mxu0 0
        %651 = vmatpush.bf16.msra.mxu0 0
        %652 = vmatpush.bf16.msra.mxu0 0
        %653 = vmatpush.bf16.msra.mxu0 %v644
        %654 = vmatmul.bf16.gmra.mxu0 %v524
        %v655 = vpop.f32.mrf.mxu0
        %v656 = vadd.f32 0.0, %v655
        %v657 = vpop.f32.mrf.mxu0
        %658 = vdwg.mxu0
        %659 = vmatpush.bf16.msra.mxu0 0
        %660 = vmatpush.bf16.msra.mxu0 0
        %661 = vmatpush.bf16.msra.mxu0 0
        %662 = vmatpush.bf16.msra.mxu0 0
        %663 = vmatpush.bf16.msra.mxu0 0
        %664 = vmatpush.bf16.msra.mxu0 0
        %665 = vmatpush.bf16.msra.mxu0 0
        %666 = vmatpush.bf16.msra.mxu0 %v644
        %667 = vmatmul.bf16.gmra.mxu0 %v540
        %v668 = vpop.f32.mrf.mxu0
        %v669 = vadd.f32 0.0, %v668
        %v670 = vpop.f32.mrf.mxu0
        %671 = vdwg.mxu0
        %672 = vmatpush.bf16.msra.mxu0 0
        %673 = vmatpush.bf16.msra.mxu0 0
        %674 = vmatpush.bf16.msra.mxu0 0
        %675 = vmatpush.bf16.msra.mxu0 0
        %676 = vmatpush.bf16.msra.mxu0 0
        %677 = vmatpush.bf16.msra.mxu0 0
        %678 = vmatpush.bf16.msra.mxu0 0
        %679 = vmatpush.bf16.msra.mxu0 %v644
        %680 = vmatmul.bf16.gmra.mxu0 %v556
        %v681 = vpop.f32.mrf.mxu0
        %v682 = vadd.f32 0.0, %v681
        %v683 = vpop.f32.mrf.mxu0
        %684 = vdwg.mxu0
        %685 = vmatpush.bf16.msra.mxu0 0
        %686 = vmatpush.bf16.msra.mxu0 0
        %687 = vmatpush.bf16.msra.mxu0 0
        %688 = vmatpush.bf16.msra.mxu0 0
        %689 = vmatpush.bf16.msra.mxu0 0
        %690 = vmatpush.bf16.msra.mxu0 0
        %691 = vmatpush.bf16.msra.mxu0 0
        %692 = vmatpush.bf16.msra.mxu0 %v644
        %693 = vmatmul.bf16.gmra.mxu0 %v572
        %v694 = vpop.f32.mrf.mxu0
        %v695 = vadd.f32 0.0, %v694
        %v696 = vpop.f32.mrf.mxu0
        %697 = vdwg.mxu0
        %698 = vmatpush.bf16.msra.mxu0 0
        %699 = vmatpush.bf16.msra.mxu0 0
        %700 = vmatpush.bf16.msra.mxu0 0
        %701 = vmatpush.bf16.msra.mxu0 0
        %702 = vmatpush.bf16.msra.mxu0 0
        %703 = vmatpush.bf16.msra.mxu0 0
        %704 = vmatpush.bf16.msra.mxu0 0
        %705 = vmatpush.bf16.msra.mxu0 %v644
        %706 = vmatmul.bf16.gmra.mxu0 %v588
        %v707 = vpop.f32.mrf.mxu0
        %v708 = vadd.f32 0.0, %v707
        %v709 = vpop.f32.mrf.mxu0
        %710 = vdwg.mxu0
        %711 = vmatpush.bf16.msra.mxu0 0
        %712 = vmatpush.bf16.msra.mxu0 0
        %713 = vmatpush.bf16.msra.mxu0 0
        %714 = vmatpush.bf16.msra.mxu0 0
        %715 = vmatpush.bf16.msra.mxu0 0
        %716 = vmatpush.bf16.msra.mxu0 0
        %717 = vmatpush.bf16.msra.mxu0 0
        %718 = vmatpush.bf16.msra.mxu0 %v644
        %719 = vmatmul.bf16.gmra.mxu0 %v604
        %v720 = vpop.f32.mrf.mxu0
        %v721 = vadd.f32 0.0, %v720
        %v722 = vpop.f32.mrf.mxu0
        %723 = vdwg.mxu0
        %724 = vmatpush.bf16.msra.mxu0 0
        %725 = vmatpush.bf16.msra.mxu0 0
        %726 = vmatpush.bf16.msra.mxu0 0
        %727 = vmatpush.bf16.msra.mxu0 0
        %728 = vmatpush.bf16.msra.mxu0 0
        %729 = vmatpush.bf16.msra.mxu0 0
        %730 = vmatpush.bf16.msra.mxu0 0
        %731 = vmatpush.bf16.msra.mxu0 %v644
        %732 = vmatmul.bf16.gmra.mxu0 %v620
        %v733 = vpop.f32.mrf.mxu0
        %v734 = vadd.f32 0.0, %v733
        %v735 = vpop.f32.mrf.mxu0
        %736 = vdwg.mxu0
        %v738 = vsel %vm282, %v258, 0
        %740 = vmatpush.bf16.msra.mxu0 0
        %741 = vmatpush.bf16.msra.mxu0 0
        %742 = vmatpush.bf16.msra.mxu0 0
        %743 = vmatpush.bf16.msra.mxu0 0
        %744 = vmatpush.bf16.msra.mxu0 0
        %745 = vmatpush.bf16.msra.mxu0 0
        %746 = vmatpush.bf16.msra.mxu0 0
        %747 = vmatpush.bf16.msra.mxu0 %v644
        %748 = vmatmul.bf16.gmra.mxu0 %v738
        %v749 = vpop.f32.mrf.mxu0
        %v750 = vadd.f32 0.0, %v749
        %v751 = vpop.f32.mrf.mxu0
        %752 = vdwg.mxu0
        %v753 = vadd.f32 %v520, %v656
        %v754 = vadd.f32 %v536, %v669
        %v755 = vadd.f32 %v552, %v682
        %v756 = vadd.f32 %v568, %v695
        %v757 = vadd.f32 %v584, %v708
        %v758 = vadd.f32 %v600, %v721
        %v759 = vadd.f32 %v616, %v734
        %v760 = vadd.f32 %v632, %v750
        %s761 = scalar_lea.vmem %s1, 24
        %v762 = vld [vmem:[%s761] sm:$0xf]
        %v763 = vld [vmem:[%s761 + $0x4] sm:$0x3]
        %v766 = vunpack.c.l.b16 %v762
        %v767 = vunpack.c.l.b16 %v763
        %v768 = vpack.c.b16 %v767, %v766
        %v770 = vsel %vm286, %v768, 0
        %772 = vmatpush.bf16.msra.mxu0 0
        %773 = vmatpush.bf16.msra.mxu0 0
        %774 = vmatpush.bf16.msra.mxu0 0
        %775 = vmatpush.bf16.msra.mxu0 0
        %776 = vmatpush.bf16.msra.mxu0 0
        %777 = vmatpush.bf16.msra.mxu0 0
        %778 = vmatpush.bf16.msra.mxu0 0
        %779 = vmatpush.bf16.msra.mxu0 %v770
        %780 = vmatmul.bf16.gmra.mxu0 %v316
        %v781 = vpop.f32.mrf.mxu0
        %v782 = vadd.f32 0.0, %v781
        %v783 = vpop.f32.mrf.mxu0
        %784 = vdwg.mxu0
        %785 = vmatpush.bf16.msra.mxu0 0
        %786 = vmatpush.bf16.msra.mxu0 0
        %787 = vmatpush.bf16.msra.mxu0 0
        %788 = vmatpush.bf16.msra.mxu0 0
        %789 = vmatpush.bf16.msra.mxu0 0
        %790 = vmatpush.bf16.msra.mxu0 0
        %791 = vmatpush.bf16.msra.mxu0 0
        %792 = vmatpush.bf16.msra.mxu0 %v770
        %793 = vmatmul.bf16.gmra.mxu0 %v344
        %v794 = vpop.f32.mrf.mxu0
        %v795 = vadd.f32 0.0, %v794
        %v796 = vpop.f32.mrf.mxu0
        %797 = vdwg.mxu0
        %798 = vmatpush.bf16.msra.mxu0 0
        %799 = vmatpush.bf16.msra.mxu0 0
        %800 = vmatpush.bf16.msra.mxu0 0
        %801 = vmatpush.bf16.msra.mxu0 0
        %802 = vmatpush.bf16.msra.mxu0 0
        %803 = vmatpush.bf16.msra.mxu0 0
        %804 = vmatpush.bf16.msra.mxu0 0
        %805 = vmatpush.bf16.msra.mxu0 %v770
        %806 = vmatmul.bf16.gmra.mxu0 %v372
        %v807 = vpop.f32.mrf.mxu0
        %v808 = vadd.f32 0.0, %v807
        %v809 = vpop.f32.mrf.mxu0
        %810 = vdwg.mxu0
        %811 = vmatpush.bf16.msra.mxu0 0
        %812 = vmatpush.bf16.msra.mxu0 0
        %813 = vmatpush.bf16.msra.mxu0 0
        %814 = vmatpush.bf16.msra.mxu0 0
        %815 = vmatpush.bf16.msra.mxu0 0
        %816 = vmatpush.bf16.msra.mxu0 0
        %817 = vmatpush.bf16.msra.mxu0 0
        %818 = vmatpush.bf16.msra.mxu0 %v770
        %819 = vmatmul.bf16.gmra.mxu0 %v400
        %v820 = vpop.f32.mrf.mxu0
        %v821 = vadd.f32 0.0, %v820
        %v822 = vpop.f32.mrf.mxu0
        %823 = vdwg.mxu0
        %824 = vmatpush.bf16.msra.mxu0 0
        %825 = vmatpush.bf16.msra.mxu0 0
        %826 = vmatpush.bf16.msra.mxu0 0
        %827 = vmatpush.bf16.msra.mxu0 0
        %828 = vmatpush.bf16.msra.mxu0 0
        %829 = vmatpush.bf16.msra.mxu0 0
        %830 = vmatpush.bf16.msra.mxu0 0
        %831 = vmatpush.bf16.msra.mxu0 %v770
        %832 = vmatmul.bf16.gmra.mxu0 %v428
        %v833 = vpop.f32.mrf.mxu0
        %v834 = vadd.f32 0.0, %v833
        %v835 = vpop.f32.mrf.mxu0
        %836 = vdwg.mxu0
        %837 = vmatpush.bf16.msra.mxu0 0
        %838 = vmatpush.bf16.msra.mxu0 0
        %839 = vmatpush.bf16.msra.mxu0 0
        %840 = vmatpush.bf16.msra.mxu0 0
        %841 = vmatpush.bf16.msra.mxu0 0
        %842 = vmatpush.bf16.msra.mxu0 0
        %843 = vmatpush.bf16.msra.mxu0 0
        %844 = vmatpush.bf16.msra.mxu0 %v770
        %845 = vmatmul.bf16.gmra.mxu0 %v456
        %v846 = vpop.f32.mrf.mxu0
        %v847 = vadd.f32 0.0, %v846
        %v848 = vpop.f32.mrf.mxu0
        %849 = vdwg.mxu0
        %850 = vmatpush.bf16.msra.mxu0 0
        %851 = vmatpush.bf16.msra.mxu0 0
        %852 = vmatpush.bf16.msra.mxu0 0
        %853 = vmatpush.bf16.msra.mxu0 0
        %854 = vmatpush.bf16.msra.mxu0 0
        %855 = vmatpush.bf16.msra.mxu0 0
        %856 = vmatpush.bf16.msra.mxu0 0
        %857 = vmatpush.bf16.msra.mxu0 %v770
        %858 = vmatmul.bf16.gmra.mxu0 %v484
        %v859 = vpop.f32.mrf.mxu0
        %v860 = vadd.f32 0.0, %v859
        %v861 = vpop.f32.mrf.mxu0
        %862 = vdwg.mxu0
        %v865 = vunpack.c.l.b16 %v258
        %v866 = vunpack.c.l.b16 %v259
        %v867 = vpack.c.b16 %v866, %v865
        %v869 = vshrl.u32 %v867, 16
        %v871 = vshll.u32 %v867, 16
        %v873 = vrot.slane %v871, 1
        %v874 = vor.u32 %v869, %v873
        %v876 = vsel %vm282, %v874, 0
        %878 = vmatpush.bf16.msra.mxu0 0
        %879 = vmatpush.bf16.msra.mxu0 0
        %880 = vmatpush.bf16.msra.mxu0 0
        %881 = vmatpush.bf16.msra.mxu0 0
        %882 = vmatpush.bf16.msra.mxu0 0
        %883 = vmatpush.bf16.msra.mxu0 0
        %884 = vmatpush.bf16.msra.mxu0 0
        %885 = vmatpush.bf16.msra.mxu0 %v770
        %886 = vmatmul.bf16.gmra.mxu0 %v876
        %v887 = vpop.f32.mrf.mxu0
        %v888 = vadd.f32 0.0, %v887
        %v889 = vpop.f32.mrf.mxu0
        %890 = vdwg.mxu0
        %v891 = vadd.f32 %v753, %v782
        %v892 = vadd.f32 %v754, %v795
        %v893 = vadd.f32 %v755, %v808
        %v894 = vadd.f32 %v756, %v821
        %v895 = vadd.f32 %v757, %v834
        %v896 = vadd.f32 %v758, %v847
        %v897 = vadd.f32 %v759, %v860
        %v898 = vadd.f32 %v760, %v888
        %v899 = vld [vmem:[%s2] sm:$0x1]
        %v901 = vperm.slane %v899, 0
        %v903 = vadd.f32 %v891, %v901
        %v904 = vadd.f32 %v892, %v901
        %v905 = vadd.f32 %v893, %v901
        %v906 = vadd.f32 %v894, %v901
        %v907 = vadd.f32 %v895, %v901
        %v908 = vadd.f32 %v896, %v901
        %v909 = vadd.f32 %v897, %v901
        %v910 = vadd.f32 %v898, %v901
        %vm911 = vcmask 130048
        %v912 = vsel %vm911, %v903, 0.0
        %v913 = vrot.slane %v912, 4
        %v914 = vadd.f32 %v912, %v913
        %v915 = vrot.slane %v914, 2
        %v916 = vadd.f32 %v914, %v915
        %v917 = vrot.slane %v916, 1
        %v918 = vadd.f32 %v916, %v917
        %v919 = vsel %vm911, %v904, 0.0
        %v920 = vrot.slane %v919, 4
        %v921 = vadd.f32 %v919, %v920
        %v922 = vrot.slane %v921, 2
        %v923 = vadd.f32 %v921, %v922
        %v924 = vrot.slane %v923, 1
        %v925 = vadd.f32 %v923, %v924
        %v926 = vsel %vm911, %v905, 0.0
        %v927 = vrot.slane %v926, 4
        %v928 = vadd.f32 %v926, %v927
        %v929 = vrot.slane %v928, 2
        %v930 = vadd.f32 %v928, %v929
        %v931 = vrot.slane %v930, 1
        %v932 = vadd.f32 %v930, %v931
        %v933 = vsel %vm911, %v906, 0.0
        %v934 = vrot.slane %v933, 4
        %v935 = vadd.f32 %v933, %v934
        %v936 = vrot.slane %v935, 2
        %v937 = vadd.f32 %v935, %v936
        %v938 = vrot.slane %v937, 1
        %v939 = vadd.f32 %v937, %v938
        %v940 = vsel %vm911, %v907, 0.0
        %v941 = vrot.slane %v940, 4
        %v942 = vadd.f32 %v940, %v941
        %v943 = vrot.slane %v942, 2
        %v944 = vadd.f32 %v942, %v943
        %v945 = vrot.slane %v944, 1
        %v946 = vadd.f32 %v944, %v945
        %v947 = vsel %vm911, %v908, 0.0
        %v948 = vrot.slane %v947, 4
        %v949 = vadd.f32 %v947, %v948
        %v950 = vrot.slane %v949, 2
        %v951 = vadd.f32 %v949, %v950
        %v952 = vrot.slane %v951, 1
        %v953 = vadd.f32 %v951, %v952
        %v954 = vsel %vm911, %v909, 0.0
        %v955 = vrot.slane %v954, 4
        %v956 = vadd.f32 %v954, %v955
        %v957 = vrot.slane %v956, 2
        %v958 = vadd.f32 %v956, %v957
        %v959 = vrot.slane %v958, 1
        %v960 = vadd.f32 %v958, %v959
        %v961 = vsel %vm911, %v910, 0.0
        %v962 = vrot.slane %v961, 4
        %v963 = vadd.f32 %v961, %v962
        %v964 = vrot.slane %v963, 2
        %v965 = vadd.f32 %v963, %v964
        %v966 = vrot.slane %v965, 1
        %v967 = vadd.f32 %v965, %v966
        %v968 = vrcp.pop 8.0
        %v969 = vmul.f32 8.0, %v968
        %v970 = vsub.f32 1.0, %v969
        %v971 = vmul.f32 %v968, %v970
        %v972 = vadd.f32 %v968, %v971
        %vm973 = vweird.f32 %v968
        %v974 = vsel %vm973, %v968, %v972
        %v975 = vmul.f32 %v918, %v974
        %v976 = vmul.f32 %v925, %v974
        %v977 = vmul.f32 %v932, %v974
        %v978 = vmul.f32 %v939, %v974
        %v979 = vmul.f32 %v946, %v974
        %v980 = vmul.f32 %v953, %v974
        %v981 = vmul.f32 %v960, %v974
        %v982 = vmul.f32 %v967, %v974
        %v983 = vsel %vm911, %v975, 0.0
        %v984 = vsel %vm911, %v976, 0.0
        %v985 = vadd.f32 %v983, %v984
        %v986 = vsel %vm911, %v977, 0.0
        %v987 = vadd.f32 %v985, %v986
        %v988 = vsel %vm911, %v978, 0.0
        %v989 = vadd.f32 %v987, %v988
        %v990 = vsel %vm911, %v979, 0.0
        %v991 = vadd.f32 %v989, %v990
        %v992 = vsel %vm911, %v980, 0.0
        %v993 = vadd.f32 %v991, %v992
        %v994 = vsel %vm911, %v981, 0.0
        %v995 = vadd.f32 %v993, %v994
        %v996 = vsel %vm911, %v982, 0.0
        %v997 = vadd.f32 %v995, %v996
        %v998 = vmul.f32 %v997, %v974
        %v999 = vsub.f32 %v903, %v998
        %v1000 = vsub.f32 %v904, %v998
        %v1001 = vsub.f32 %v905, %v998
        %v1002 = vsub.f32 %v906, %v998
        %v1003 = vsub.f32 %v907, %v998
        %v1004 = vsub.f32 %v908, %v998
        %v1005 = vsub.f32 %v909, %v998
        %v1006 = vsub.f32 %v910, %v998
        %v1007 = vmul.f32 %v999, %v999
        %v1008 = vmul.f32 %v1000, %v1000
        %v1009 = vmul.f32 %v1001, %v1001
        %v1010 = vmul.f32 %v1002, %v1002
        %v1011 = vmul.f32 %v1003, %v1003
        %v1012 = vmul.f32 %v1004, %v1004
        %v1013 = vmul.f32 %v1005, %v1005
        %v1014 = vmul.f32 %v1006, %v1006
        %v1015 = vsel %vm911, %v1007, 0.0
        %v1016 = vrot.slane %v1015, 4
        %v1017 = vadd.f32 %v1015, %v1016
        %v1018 = vrot.slane %v1017, 2
        %v1019 = vadd.f32 %v1017, %v1018
        %v1020 = vrot.slane %v1019, 1
        %v1021 = vadd.f32 %v1019, %v1020
        %v1022 = vsel %vm911, %v1008, 0.0
        %v1023 = vrot.slane %v1022, 4
        %v1024 = vadd.f32 %v1022, %v1023
        %v1025 = vrot.slane %v1024, 2
        %v1026 = vadd.f32 %v1024, %v1025
        %v1027 = vrot.slane %v1026, 1
        %v1028 = vadd.f32 %v1026, %v1027
        %v1029 = vsel %vm911, %v1009, 0.0
        %v1030 = vrot.slane %v1029, 4
        %v1031 = vadd.f32 %v1029, %v1030
        %v1032 = vrot.slane %v1031, 2
        %v1033 = vadd.f32 %v1031, %v1032
        %v1034 = vrot.slane %v1033, 1
        %v1035 = vadd.f32 %v1033, %v1034
        %v1036 = vsel %vm911, %v1010, 0.0
        %v1037 = vrot.slane %v1036, 4
        %v1038 = vadd.f32 %v1036, %v1037
        %v1039 = vrot.slane %v1038, 2
        %v1040 = vadd.f32 %v1038, %v1039
        %v1041 = vrot.slane %v1040, 1
        %v1042 = vadd.f32 %v1040, %v1041
        %v1043 = vsel %vm911, %v1011, 0.0
        %v1044 = vrot.slane %v1043, 4
        %v1045 = vadd.f32 %v1043, %v1044
        %v1046 = vrot.slane %v1045, 2
        %v1047 = vadd.f32 %v1045, %v1046
        %v1048 = vrot.slane %v1047, 1
        %v1049 = vadd.f32 %v1047, %v1048
        %v1050 = vsel %vm911, %v1012, 0.0
        %v1051 = vrot.slane %v1050, 4
        %v1052 = vadd.f32 %v1050, %v1051
        %v1053 = vrot.slane %v1052, 2
        %v1054 = vadd.f32 %v1052, %v1053
        %v1055 = vrot.slane %v1054, 1
        %v1056 = vadd.f32 %v1054, %v1055
        %v1057 = vsel %vm911, %v1013, 0.0
        %v1058 = vrot.slane %v1057, 4
        %v1059 = vadd.f32 %v1057, %v1058
        %v1060 = vrot.slane %v1059, 2
        %v1061 = vadd.f32 %v1059, %v1060
        %v1062 = vrot.slane %v1061, 1
        %v1063 = vadd.f32 %v1061, %v1062
        %v1064 = vsel %vm911, %v1014, 0.0
        %v1065 = vrot.slane %v1064, 4
        %v1066 = vadd.f32 %v1064, %v1065
        %v1067 = vrot.slane %v1066, 2
        %v1068 = vadd.f32 %v1066, %v1067
        %v1069 = vrot.slane %v1068, 1
        %v1070 = vadd.f32 %v1068, %v1069
        %v1071 = vmul.f32 %v1021, %v974
        %v1072 = vmul.f32 %v1028, %v974
        %v1073 = vmul.f32 %v1035, %v974
        %v1074 = vmul.f32 %v1042, %v974
        %v1075 = vmul.f32 %v1049, %v974
        %v1076 = vmul.f32 %v1056, %v974
        %v1077 = vmul.f32 %v1063, %v974
        %v1078 = vmul.f32 %v1070, %v974
        %v1079 = vsel %vm911, %v1071, 0.0
        %v1080 = vsel %vm911, %v1072, 0.0
        %v1081 = vadd.f32 %v1079, %v1080
        %v1082 = vsel %vm911, %v1073, 0.0
        %v1083 = vadd.f32 %v1081, %v1082
        %v1084 = vsel %vm911, %v1074, 0.0
        %v1085 = vadd.f32 %v1083, %v1084
        %v1086 = vsel %vm911, %v1075, 0.0
        %v1087 = vadd.f32 %v1085, %v1086
        %v1088 = vsel %vm911, %v1076, 0.0
        %v1089 = vadd.f32 %v1087, %v1088
        %v1090 = vsel %vm911, %v1077, 0.0
        %v1091 = vadd.f32 %v1089, %v1090
        %v1092 = vsel %vm911, %v1078, 0.0
        %v1093 = vadd.f32 %v1091, %v1092
        %v1094 = vmul.f32 %v1093, %v974
        %v1095 = vadd.f32 %v1094, 1e-05
        %v1096 = vrsqrt.pop %v1095
        %v1097 = vmul.f32 %v1096, %v1095
        %v1098 = vmul.f32 %v1097, %v1096
        %v1099 = vmul.f32 0.5, %v1098
        %v1100 = vsub.f32 1.5, %v1099
        %v1101 = vmul.f32 %v1096, %v1100
        %vm1102 = vweird.f32 %v1095
        %vm1103 = vweird.f32 %v1096
        %vm1104 = vmor %vm1102, %vm1103
        %v1105 = vsel %vm1104, %v1096, %v1101
        %v1106 = vmul.f32 %v999, %v1105
        %v1107 = vmul.f32 %v1000, %v1105
        %v1108 = vmul.f32 %v1001, %v1105
        %v1109 = vmul.f32 %v1002, %v1105
        %v1110 = vmul.f32 %v1003, %v1105
        %v1111 = vmul.f32 %v1004, %v1105
        %v1112 = vmul.f32 %v1005, %v1105
        %v1113 = vmul.f32 %v1006, %v1105
        %v1114 = vmax.f32 %v1106, 0.0
        %v1115 = vmax.f32 %v1107, 0.0
        %v1116 = vmax.f32 %v1108, 0.0
        %v1117 = vmax.f32 %v1109, 0.0
        %v1118 = vmax.f32 %v1110, 0.0
        %v1119 = vmax.f32 %v1111, 0.0
        %v1120 = vmax.f32 %v1112, 0.0
        %v1121 = vmax.f32 %v1113, 0.0
        %1122 = vst.msk [vmem:[%s163] sm:$0xff] %vm911, %v1114
        %1123 = vst.msk [vmem:[%s163 + $0x8] sm:$0xff] %vm911, %v1115
        %1124 = vst.msk [vmem:[%s163 + $0x10] sm:$0xff] %vm911, %v1116
        %1125 = vst.msk [vmem:[%s163 + $0x18] sm:$0xff] %vm911, %v1117
        %1126 = vst.msk [vmem:[%s163 + $0x20] sm:$0xff] %vm911, %v1118
        %1127 = vst.msk [vmem:[%s163 + $0x28] sm:$0xff] %vm911, %v1119
        %1128 = vst.msk [vmem:[%s163 + $0x30] sm:$0xff] %vm911, %v1120
        %1129 = vst.msk [vmem:[%s163 + $0x38] sm:$0xff] %vm911, %v1121
        %s1130 = sand.u32 %s93, 1
        %s1131 = scalar_lea.sflag [#allocation3], %s1130
        %s1132 = sand.u32 %s93, 1
        %s1133 = smul.addr %s1132, 64
        %s1134 = scalar_lea.vmem [#allocation2], %s1133
        // Predicated region
        $region33: #{tpu_custom_call.1} parent=31 // pred_check
          %p1135 = pneg %p103
        $region34: #{tpu_custom_call.1} parent=31 // pred_check_branch
          %1137 = sbr.rel (%p1135) target = $region36
        $region35: #{tpu_custom_call.1} parent=31 // pred_region
          %1139 = vsyncadd %s1131, 0
          %s1140 = smul.addr %s17, 8
          %s1141 = smul.addr %s1140, 8
          %s1142 = scalar_lea.hbm %s3, %s1141
          %s1143 = sshll.u32 %s1134, 4
          %s1144 = int_to_ptr.vmem [resolvable:$true] %s1143
          %s1145 = sshll.u32 %s1142, 4
          %s1146 = int_to_ptr.hbm [resolvable:$true] %s1145
          %1151 = dma.vmem_to_hbm [thread:$0]  %s1144, 1024, %s1146, %s1131, 128, 128, 8
        $region36: #{tpu_custom_call.1} parent=31 // pred_fallthru
          _
      $region32: #{tpu_custom_call.1} parent=5 // pred_fallthru
        _
      %p1152 = scmp.le.s32.totalorder 2, %s12
      // Predicated region
      $region37: #{tpu_custom_call.1} parent=5 // pred_check
        %p1153 = pneg %p1152
      $region38: #{tpu_custom_call.1} parent=5 // pred_check_branch
        %1155 = sbr.rel (%p1153) target = $region40
      $region39: #{tpu_custom_call.1} parent=5 // pred_region
        %s1156 = ssub.s32 %s12, 2
        // Predicated region
        $region41: #{tpu_custom_call.1} parent=39 // pred_check
          %p1157 = pneg %p109
        $region42: #{tpu_custom_call.1} parent=39 // pred_check_branch
          %1159 = sbr.rel (%p1157) target = $region44
        $region43: #{tpu_custom_call.1} parent=39 // pred_region
          %s1160 = sand.u32 %s94, 1
          %s1161 = scalar_lea.sflag [#allocation3], %s1160
          %s1162 = sand.u32 %s94, 1
          %s1163 = smul.addr %s1162, 64
          %s1164 = scalar_lea.vmem [#allocation2], %s1163
          %1166 = dma.done %s1161, 1024
        $region44: #{tpu_custom_call.1} parent=39 // pred_fallthru
          _
      $region40: #{tpu_custom_call.1} parent=5 // pred_fallthru
        _
    $region6: #{tpu_custom_call.1} parent=1 // loop_footer
      %s16 = sadd.s32 1, %s12
    $region7: #{tpu_custom_call.1} parent=1 // loop_footer_branch
      %11 = sbr.rel target = $region3
    $region8: #{tpu_custom_call.1} parent=1 // loop_exit
      _
    %1167 = vsyncpa [#allocation3], 1
    %s1168 = scalar_lea.sflag [#allocation3], 1
    %1169 = vsyncpa %s1168, 1

</llo_original>
